<compile_context>
chip_gen: v7x
topology: tpu7x:2x2x1
jax: 0.10.0
libtpu: 0.0.40
codegen_flags: <defaults>
</compile_context>

<pallas_src>
import functools

import jax
import jax.numpy as jnp
import numpy as np
from jax.experimental import pallas as pl
from jax.experimental.pallas import tpu as pltpu


def _npcc_kernel(p_ref, t_ref, o_ref, sp, st, spt, spp, stt, *, n_valid, rem):
    # p_ref / t_ref : (TILE_R, TILE_N) chunk of the flattened (rows, N) inputs.
    # o_ref         : (TILE_R, 1) per-row scores (written on the last N-chunk).
    # sp..stt       : (TILE_R, 128) f32 lane-partial moment accumulators.
    # n_valid       : true (unpadded) number of elements per row.
    # rem           : number of valid lanes in the last N-chunk (static).
    k = pl.program_id(1)
    nk = pl.num_programs(1)
    tile_r, tile_n = p_ref.shape

    @pl.when(k == 0)
    def _():
        sp[...] = jnp.zeros_like(sp)
        st[...] = jnp.zeros_like(st)
        spt[...] = jnp.zeros_like(spt)
        spp[...] = jnp.zeros_like(spp)
        stt[...] = jnp.zeros_like(stt)

    need_mask = rem != tile_n  # static python bool
    if need_mask:
        # Valid lane count for this grid step: full except on the last chunk.
        valid_cols = jnp.where(k == nk - 1, jnp.int32(rem), jnp.int32(tile_n))
        lane = jax.lax.broadcasted_iota(jnp.int32, (tile_r, 128), 1)

    # Pure-VPU accumulation: fold the chunk 128 lanes at a time into
    # (TILE_R, 128) register partials; no per-chunk XLU work, no per-chunk
    # scratch read-modify-write.
    a_p = jnp.zeros((tile_r, 128), jnp.float32)
    a_t = jnp.zeros((tile_r, 128), jnp.float32)
    a_pt = jnp.zeros((tile_r, 128), jnp.float32)
    a_pp = jnp.zeros((tile_r, 128), jnp.float32)
    a_tt = jnp.zeros((tile_r, 128), jnp.float32)
    for j in range(tile_n // 128):
        lo = j * 128
        pj = p_ref[:, lo:lo + 128].astype(jnp.float32)
        tj = t_ref[:, lo:lo + 128].astype(jnp.float32)
        if need_mask:
            m = (lane + lo) < valid_cols
            pj = jnp.where(m, pj, 0.0)
            tj = jnp.where(m, tj, 0.0)
        a_p = a_p + pj
        a_t = a_t + tj
        a_pt = a_pt + pj * tj
        a_pp = a_pp + pj * pj
        a_tt = a_tt + tj * tj

    sp[...] += a_p
    st[...] += a_t
    spt[...] += a_pt
    spp[...] += a_pp
    stt[...] += a_tt

    @pl.when(k == nk - 1)
    def _():
        inv_n = jnp.float32(1.0 / n_valid)
        s_p = jnp.sum(sp[...], axis=-1, keepdims=True)    # (TILE_R, 1)
        s_t = jnp.sum(st[...], axis=-1, keepdims=True)
        s_pt = jnp.sum(spt[...], axis=-1, keepdims=True)
        s_pp = jnp.sum(spp[...], axis=-1, keepdims=True)
        s_tt = jnp.sum(stt[...], axis=-1, keepdims=True)
        num = s_pt - s_p * s_t * inv_n
        dp2 = jnp.maximum(s_pp - s_p * s_p * inv_n, 0.0)
        dg2 = jnp.maximum(s_tt - s_t * s_t * inv_n, 0.0)
        # Matches the PyTorch module: zero-variance channels yield inf/nan.
        score = -num * jax.lax.rsqrt(dp2 * dg2)
        o_ref[...] = score.astype(o_ref.dtype)


def _sublane_multiple(dtype):
    itemsize = jnp.dtype(dtype).itemsize
    return max(8, 32 // itemsize)   # 8 for f32, 16 for bf16, 32 for int8/fp8


def _cdiv(a, b):
    return -(-a // b)


def npcc_loss(preds, targets, reduction=True):
    """Negative Pearson correlation loss, matching NpccLoss.forward semantics.

    preds, targets: (B, C, *spatial) arrays (NCHW-like). Returns a scalar if
    reduction=True, else a (B, C) array of per-channel scores.
    """
    assert preds.shape == targets.shape
    B, C = preds.shape[0], preds.shape[1]
    n = int(np.prod(preds.shape[2:]))
    rows = B * C

    p = preds.reshape(rows, n)
    t = targets.reshape(rows, n)

    # --- row tiling (sublanes): grow up to 32 while keeping >= 2 row blocks --
    sub = max(_sublane_multiple(p.dtype), _sublane_multiple(t.dtype))
    tile_r = sub
    while tile_r * 2 <= 32 and rows >= tile_r * 4:
        tile_r *= 2

    # --- N tiling (lanes): lane-dense chunk, up to 8192; no wrapper padding --
    n128 = ((n + 127) // 128) * 128
    tile_n = min(8192, n128)
    num_k = _cdiv(n, tile_n)
    rem = n - (num_k - 1) * tile_n        # valid lanes in the last chunk
    num_r = _cdiv(rows, tile_r)

    itemsize = max(jnp.dtype(p.dtype).itemsize, jnp.dtype(t.dtype).itemsize)
    score = pl.pallas_call(
        functools.partial(_npcc_kernel, n_valid=n, rem=rem),
        out_shape=jax.ShapeDtypeStruct((rows, 1), jnp.float32),
        grid_spec=pltpu.PrefetchScalarGridSpec(
            num_scalar_prefetch=0,
            grid=(num_r, num_k),
            in_specs=[
                pl.BlockSpec((tile_r, tile_n), lambda r, k: (r, k)),
                pl.BlockSpec((tile_r, tile_n), lambda r, k: (r, k)),
            ],
            out_specs=pl.BlockSpec((tile_r, 1), lambda r, k: (r, 0)),
            scratch_shapes=[pltpu.VMEM((tile_r, 128), jnp.float32)] * 5,
        ),
        compiler_params=pltpu.CompilerParams(
            dimension_semantics=("parallel", "arbitrary"),
            vmem_limit_bytes=32 * 1024 * 1024,
        ),
        cost_estimate=pl.CostEstimate(
            flops=8 * rows * n,
            transcendentals=rows,
            bytes_accessed=2 * rows * n * itemsize + 4 * rows,
        ),
    )(p, t)

    score = score[:, 0].reshape(B, C)
    if reduction:
        return jnp.mean(score)
    return score


def _npcc_loss_ref(preds, targets, reduction=True):
    """Pure-JAX reference mirroring the PyTorch module."""
    B, C = preds.shape[0], preds.shape[1]
    p = preds.reshape(B, C, -1).astype(jnp.float32)
    t = targets.reshape(B, C, -1).astype(jnp.float32)
    pr = p - jnp.mean(p, axis=-1, keepdims=True)
    gt = t - jnp.mean(t, axis=-1, keepdims=True)
    score = -jnp.sum(pr * gt, axis=2) / (
        jnp.sqrt(jnp.sum(pr ** 2, axis=2)) * jnp.sqrt(jnp.sum(gt ** 2, axis=2)))
    return jnp.mean(score) if reduction else score


if __name__ == "__main__":
    key = jax.random.PRNGKey(0)
    k1, k2, k3, k4 = jax.random.split(key, 4)

    # Main case: lane-aligned spatial size (N = 256).
    B, C, H, W = 2, 4, 16, 16
    preds = jax.random.normal(k1, (B, C, H, W), dtype=jnp.float32)
    targets = jax.random.normal(k2, (B, C, H, W), dtype=jnp.float32)

    out = jax.block_until_ready(npcc_loss(preds, targets, reduction=True))
    ref = _npcc_loss_ref(preds, targets, reduction=True)
    np.testing.assert_allclose(np.asarray(out), np.asarray(ref),
                               rtol=1e-4, atol=1e-5)

    out_nr = jax.block_until_ready(npcc_loss(preds, targets, reduction=False))
    ref_nr = _npcc_loss_ref(preds, targets, reduction=False)
    np.testing.assert_allclose(np.asarray(out_nr), np.asarray(ref_nr),
                               rtol=1e-4, atol=1e-5)

    # Ragged case: rows not a sublane multiple, N not a lane multiple
    # (exercises boundary-block clamping + in-kernel lane masking).
    B2, C2, H2, W2 = 2, 3, 10, 10
    p2 = jax.random.normal(k3, (B2, C2, H2, W2), dtype=jnp.float32)
    t2 = jax.random.normal(k4, (B2, C2, H2, W2), dtype=jnp.float32)
    out2 = jax.block_until_ready(npcc_loss(p2, t2, reduction=False))
    ref2 = _npcc_loss_ref(p2, t2, reduction=False)
    np.testing.assert_allclose(np.asarray(out2), np.asarray(ref2),
                               rtol=1e-4, atol=1e-5)

    print("KERNEL_OK")
</pallas_src>

<mosaic_0001>
module attributes {stable_mosaic.version = 11 : i64} {
  func.func @_npcc_kernel(%arg0: i32, %arg1: i32, %arg2: memref<8x256xf32, #tpu.memory_space<vmem>>, %arg3: memref<8x256xf32, #tpu.memory_space<vmem>>, %arg4: memref<8x1xf32, #tpu.memory_space<vmem>>, %arg5: memref<8x128xf32, #tpu.memory_space<vmem>>, %arg6: memref<8x128xf32, #tpu.memory_space<vmem>>, %arg7: memref<8x128xf32, #tpu.memory_space<vmem>>, %arg8: memref<8x128xf32, #tpu.memory_space<vmem>>, %arg9: memref<8x128xf32, #tpu.memory_space<vmem>>) attributes {dimension_semantics = [#tpu.dimension_semantics<parallel>, #tpu.dimension_semantics<arbitrary>], iteration_bounds = array<i64: 1, 1>, scalar_prefetch = 0 : i64, scratch_operands = 5 : i64, tpu.core_type = #tpu.core_type<tc>, window_params = [{transform_indices = @transform_0, window_bounds = array<i64: 8, 256>}, {transform_indices = @transform_1, window_bounds = array<i64: 8, 256>}, {transform_indices = @transform_2, window_bounds = array<i64: 8, 1>}]} {
    %c0_i32 = arith.constant 0 : i32
    %0 = arith.cmpi eq, %arg1, %c0_i32 : i32
    %1 = arith.extui %0 : i1 to i32
    %c0_i32_0 = arith.constant 0 : i32
    %2 = arith.cmpi ne, %1, %c0_i32_0 : i32
    scf.if %2 {
      %cst_33 = arith.constant 0.000000e+00 : f32
      %46 = vector.broadcast %cst_33 : f32 to vector<8x128xf32>
      %c0_34 = arith.constant 0 : index
      %c0_35 = arith.constant 0 : index
      %47 = vector.load %arg5[%c0_34, %c0_35] : memref<8x128xf32, #tpu.memory_space<vmem>>, vector<8x128xf32>
      tpu.vector_store %arg5[%c0_34, %c0_35], %46 {strides = array<i32>} : memref<8x128xf32, #tpu.memory_space<vmem>>, vector<8x128xf32>,
      %cst_36 = arith.constant 0.000000e+00 : f32
      %48 = vector.broadcast %cst_36 : f32 to vector<8x128xf32>
      %c0_37 = arith.constant 0 : index
      %c0_38 = arith.constant 0 : index
      %49 = vector.load %arg6[%c0_37, %c0_38] : memref<8x128xf32, #tpu.memory_space<vmem>>, vector<8x128xf32>
      tpu.vector_store %arg6[%c0_37, %c0_38], %48 {strides = array<i32>} : memref<8x128xf32, #tpu.memory_space<vmem>>, vector<8x128xf32>,
      %cst_39 = arith.constant 0.000000e+00 : f32
      %50 = vector.broadcast %cst_39 : f32 to vector<8x128xf32>
      %c0_40 = arith.constant 0 : index
      %c0_41 = arith.constant 0 : index
      %51 = vector.load %arg7[%c0_40, %c0_41] : memref<8x128xf32, #tpu.memory_space<vmem>>, vector<8x128xf32>
      tpu.vector_store %arg7[%c0_40, %c0_41], %50 {strides = array<i32>} : memref<8x128xf32, #tpu.memory_space<vmem>>, vector<8x128xf32>,
      %cst_42 = arith.constant 0.000000e+00 : f32
      %52 = vector.broadcast %cst_42 : f32 to vector<8x128xf32>
      %c0_43 = arith.constant 0 : index
      %c0_44 = arith.constant 0 : index
      %53 = vector.load %arg8[%c0_43, %c0_44] : memref<8x128xf32, #tpu.memory_space<vmem>>, vector<8x128xf32>
      tpu.vector_store %arg8[%c0_43, %c0_44], %52 {strides = array<i32>} : memref<8x128xf32, #tpu.memory_space<vmem>>, vector<8x128xf32>,
      %cst_45 = arith.constant 0.000000e+00 : f32
      %54 = vector.broadcast %cst_45 : f32 to vector<8x128xf32>
      %c0_46 = arith.constant 0 : index
      %c0_47 = arith.constant 0 : index
      %55 = vector.load %arg9[%c0_46, %c0_47] : memref<8x128xf32, #tpu.memory_space<vmem>>, vector<8x128xf32>
      tpu.vector_store %arg9[%c0_46, %c0_47], %54 {strides = array<i32>} : memref<8x128xf32, #tpu.memory_space<vmem>>, vector<8x128xf32>,
    } else {
    }
    %cst = arith.constant 0.000000e+00 : f32
    %3 = vector.broadcast %cst : f32 to vector<8x128xf32>
    %cst_1 = arith.constant 0.000000e+00 : f32
    %4 = vector.broadcast %cst_1 : f32 to vector<8x128xf32>
    %cst_2 = arith.constant 0.000000e+00 : f32
    %5 = vector.broadcast %cst_2 : f32 to vector<8x128xf32>
    %cst_3 = arith.constant 0.000000e+00 : f32
    %6 = vector.broadcast %cst_3 : f32 to vector<8x128xf32>
    %cst_4 = arith.constant 0.000000e+00 : f32
    %7 = vector.broadcast %cst_4 : f32 to vector<8x128xf32>
    %c0 = arith.constant 0 : index
    %c0_5 = arith.constant 0 : index
    %8 = vector.load %arg2[%c0, %c0_5] : memref<8x256xf32, #tpu.memory_space<vmem>>, vector<8x128xf32>
    %c0_6 = arith.constant 0 : index
    %c0_7 = arith.constant 0 : index
    %9 = vector.load %arg3[%c0_6, %c0_7] : memref<8x256xf32, #tpu.memory_space<vmem>>, vector<8x128xf32>
    %10 = arith.addf %3, %8 : vector<8x128xf32>
    %11 = arith.addf %4, %9 : vector<8x128xf32>
    %12 = arith.mulf %8, %9 : vector<8x128xf32>
    %13 = arith.addf %5, %12 : vector<8x128xf32>
    %14 = arith.mulf %8, %8 : vector<8x128xf32>
    %15 = arith.addf %6, %14 : vector<8x128xf32>
    %16 = arith.mulf %9, %9 : vector<8x128xf32>
    %17 = arith.addf %7, %16 : vector<8x128xf32>
    %c0_8 = arith.constant 0 : index
    %c128 = arith.constant 128 : index
    %18 = vector.load %arg2[%c0_8, %c128] : memref<8x256xf32, #tpu.memory_space<vmem>>, vector<8x128xf32>
    %c0_9 = arith.constant 0 : index
    %c128_10 = arith.constant 128 : index
    %19 = vector.load %arg3[%c0_9, %c128_10] : memref<8x256xf32, #tpu.memory_space<vmem>>, vector<8x128xf32>
    %20 = arith.addf %10, %18 : vector<8x128xf32>
    %21 = arith.addf %11, %19 : vector<8x128xf32>
    %22 = arith.mulf %18, %19 : vector<8x128xf32>
    %23 = arith.addf %13, %22 : vector<8x128xf32>
    %24 = arith.mulf %18, %18 : vector<8x128xf32>
    %25 = arith.addf %15, %24 : vector<8x128xf32>
    %26 = arith.mulf %19, %19 : vector<8x128xf32>
    %27 = arith.addf %17, %26 : vector<8x128xf32>
    %c0_11 = arith.constant 0 : index
    %c0_12 = arith.constant 0 : index
    %28 = vector.load %arg5[%c0_11, %c0_12] : memref<8x128xf32, #tpu.memory_space<vmem>>, vector<8x128xf32>
    %29 = arith.addf %28, %20 : vector<8x128xf32>
    %c0_13 = arith.constant 0 : index
    %c0_14 = arith.constant 0 : index
    %30 = vector.load %arg5[%c0_13, %c0_14] : memref<8x128xf32, #tpu.memory_space<vmem>>, vector<8x128xf32>
    tpu.vector_store %arg5[%c0_13, %c0_14], %29 {strides = array<i32>} : memref<8x128xf32, #tpu.memory_space<vmem>>, vector<8x128xf32>,
    %c0_15 = arith.constant 0 : index
    %c0_16 = arith.constant 0 : index
    %31 = vector.load %arg6[%c0_15, %c0_16] : memref<8x128xf32, #tpu.memory_space<vmem>>, vector<8x128xf32>
    %32 = arith.addf %31, %21 : vector<8x128xf32>
    %c0_17 = arith.constant 0 : index
    %c0_18 = arith.constant 0 : index
    %33 = vector.load %arg6[%c0_17, %c0_18] : memref<8x128xf32, #tpu.memory_space<vmem>>, vector<8x128xf32>
    tpu.vector_store %arg6[%c0_17, %c0_18], %32 {strides = array<i32>} : memref<8x128xf32, #tpu.memory_space<vmem>>, vector<8x128xf32>,
    %c0_19 = arith.constant 0 : index
    %c0_20 = arith.constant 0 : index
    %34 = vector.load %arg7[%c0_19, %c0_20] : memref<8x128xf32, #tpu.memory_space<vmem>>, vector<8x128xf32>
    %35 = arith.addf %34, %23 : vector<8x128xf32>
    %c0_21 = arith.constant 0 : index
    %c0_22 = arith.constant 0 : index
    %36 = vector.load %arg7[%c0_21, %c0_22] : memref<8x128xf32, #tpu.memory_space<vmem>>, vector<8x128xf32>
    tpu.vector_store %arg7[%c0_21, %c0_22], %35 {strides = array<i32>} : memref<8x128xf32, #tpu.memory_space<vmem>>, vector<8x128xf32>,
    %c0_23 = arith.constant 0 : index
    %c0_24 = arith.constant 0 : index
    %37 = vector.load %arg8[%c0_23, %c0_24] : memref<8x128xf32, #tpu.memory_space<vmem>>, vector<8x128xf32>
    %38 = arith.addf %37, %25 : vector<8x128xf32>
    %c0_25 = arith.constant 0 : index
    %c0_26 = arith.constant 0 : index
    %39 = vector.load %arg8[%c0_25, %c0_26] : memref<8x128xf32, #tpu.memory_space<vmem>>, vector<8x128xf32>
    tpu.vector_store %arg8[%c0_25, %c0_26], %38 {strides = array<i32>} : memref<8x128xf32, #tpu.memory_space<vmem>>, vector<8x128xf32>,
    %c0_27 = arith.constant 0 : index
    %c0_28 = arith.constant 0 : index
    %40 = vector.load %arg9[%c0_27, %c0_28] : memref<8x128xf32, #tpu.memory_space<vmem>>, vector<8x128xf32>
    %41 = arith.addf %40, %27 : vector<8x128xf32>
    %c0_29 = arith.constant 0 : index
    %c0_30 = arith.constant 0 : index
    %42 = vector.load %arg9[%c0_29, %c0_30] : memref<8x128xf32, #tpu.memory_space<vmem>>, vector<8x128xf32>
    tpu.vector_store %arg9[%c0_29, %c0_30], %41 {strides = array<i32>} : memref<8x128xf32, #tpu.memory_space<vmem>>, vector<8x128xf32>,
    %c0_i32_31 = arith.constant 0 : i32
    %43 = arith.cmpi eq, %arg1, %c0_i32_31 : i32
    %44 = arith.extui %43 : i1 to i32
    %c0_i32_32 = arith.constant 0 : i32
    %45 = arith.cmpi ne, %44, %c0_i32_32 : i32
    scf.if %45 {
      %c0_33 = arith.constant 0 : index
      %c0_34 = arith.constant 0 : index
      %46 = vector.load %arg5[%c0_33, %c0_34] : memref<8x128xf32, #tpu.memory_space<vmem>>, vector<8x128xf32>
      %cst_35 = arith.constant dense<0.000000e+00> : vector<8xf32>
      %47 = vector.multi_reduction <add>, %46, %cst_35 [1] : vector<8x128xf32> to vector<8xf32>
      %48 = vector.shape_cast %47 : vector<8xf32> to vector<8x1xf32>
      %c0_36 = arith.constant 0 : index
      %c0_37 = arith.constant 0 : index
      %49 = vector.load %arg6[%c0_36, %c0_37] : memref<8x128xf32, #tpu.memory_space<vmem>>, vector<8x128xf32>
      %cst_38 = arith.constant dense<0.000000e+00> : vector<8xf32>
      %50 = vector.multi_reduction <add>, %49, %cst_38 [1] : vector<8x128xf32> to vector<8xf32>
      %51 = vector.shape_cast %50 : vector<8xf32> to vector<8x1xf32>
      %c0_39 = arith.constant 0 : index
      %c0_40 = arith.constant 0 : index
      %52 = vector.load %arg7[%c0_39, %c0_40] : memref<8x128xf32, #tpu.memory_space<vmem>>, vector<8x128xf32>
      %cst_41 = arith.constant dense<0.000000e+00> : vector<8xf32>
      %53 = vector.multi_reduction <add>, %52, %cst_41 [1] : vector<8x128xf32> to vector<8xf32>
      %54 = vector.shape_cast %53 : vector<8xf32> to vector<8x1xf32>
      %c0_42 = arith.constant 0 : index
      %c0_43 = arith.constant 0 : index
      %55 = vector.load %arg8[%c0_42, %c0_43] : memref<8x128xf32, #tpu.memory_space<vmem>>, vector<8x128xf32>
      %cst_44 = arith.constant dense<0.000000e+00> : vector<8xf32>
      %56 = vector.multi_reduction <add>, %55, %cst_44 [1] : vector<8x128xf32> to vector<8xf32>
      %57 = vector.shape_cast %56 : vector<8xf32> to vector<8x1xf32>
      %c0_45 = arith.constant 0 : index
      %c0_46 = arith.constant 0 : index
      %58 = vector.load %arg9[%c0_45, %c0_46] : memref<8x128xf32, #tpu.memory_space<vmem>>, vector<8x128xf32>
      %cst_47 = arith.constant dense<0.000000e+00> : vector<8xf32>
      %59 = vector.multi_reduction <add>, %58, %cst_47 [1] : vector<8x128xf32> to vector<8xf32>
      %60 = vector.shape_cast %59 : vector<8xf32> to vector<8x1xf32>
      %61 = arith.mulf %48, %51 : vector<8x1xf32>
      %cst_48 = arith.constant 3.906250e-03 : f32
      %62 = vector.broadcast %cst_48 : f32 to vector<8x1xf32>
      %63 = arith.mulf %61, %62 : vector<8x1xf32>
      %64 = arith.subf %54, %63 : vector<8x1xf32>
      %65 = arith.mulf %48, %48 : vector<8x1xf32>
      %cst_49 = arith.constant 3.906250e-03 : f32
      %66 = vector.broadcast %cst_49 : f32 to vector<8x1xf32>
      %67 = arith.mulf %65, %66 : vector<8x1xf32>
      %68 = arith.subf %57, %67 : vector<8x1xf32>
      %cst_50 = arith.constant 0.000000e+00 : f32
      %69 = vector.broadcast %cst_50 : f32 to vector<8x1xf32>
      %70 = arith.maximumf %68, %69 : vector<8x1xf32>
      %71 = arith.mulf %51, %51 : vector<8x1xf32>
      %cst_51 = arith.constant 3.906250e-03 : f32
      %72 = vector.broadcast %cst_51 : f32 to vector<8x1xf32>
      %73 = arith.mulf %71, %72 : vector<8x1xf32>
      %74 = arith.subf %60, %73 : vector<8x1xf32>
      %cst_52 = arith.constant 0.000000e+00 : f32
      %75 = vector.broadcast %cst_52 : f32 to vector<8x1xf32>
      %76 = arith.maximumf %74, %75 : vector<8x1xf32>
      %cst_53 = arith.constant 0.000000e+00 : f32
      %77 = vector.broadcast %cst_53 : f32 to vector<8x1xf32>
      %78 = arith.subf %77, %64 : vector<8x1xf32>
      %79 = arith.mulf %70, %76 : vector<8x1xf32>
      %80 = math.rsqrt %79 : vector<8x1xf32>
      %81 = arith.mulf %78, %80 : vector<8x1xf32>
      %c0_54 = arith.constant 0 : index
      %c0_55 = arith.constant 0 : index
      %82 = vector.load %arg4[%c0_54, %c0_55] : memref<8x1xf32, #tpu.memory_space<vmem>>, vector<8x1xf32>
      tpu.vector_store %arg4[%c0_54, %c0_55], %81 {strides = array<i32>} : memref<8x1xf32, #tpu.memory_space<vmem>>, vector<8x1xf32>,
    } else {
    }
    return
  }
  func.func @transform_0(%arg0: i32, %arg1: i32) -> (i32, i32) {
    %c0_i32 = arith.constant 0 : i32
    return %arg0, %arg1 : i32, i32
  }
  func.func @transform_1(%arg0: i32, %arg1: i32) -> (i32, i32) {
    %c0_i32 = arith.constant 0 : i32
    return %arg0, %arg1 : i32, i32
  }
  func.func @transform_2(%arg0: i32, %arg1: i32) -> (i32, i32) {
    %c0_i32 = arith.constant 0 : i32
    %c0_i32_0 = arith.constant 0 : i32
    return %arg0, %c0_i32 : i32, i32
  }
}

</mosaic_0001>

<llo_original>
// kernel: tpu_custom_call.1
$region0: #{tpu_custom_call.1}
  #allocation0 [shape = 'u32[]', space=smem, size = 0x4, offset = 0x4, fixed_abs, tag = 'smem constant byte address 0x4 - core index']
  #allocation1 [shape = 'u32[144,128]{1,0:T(1,128)}', space=vmem, size = 0x12000, scoped, tag = 'internal scratch']
  #allocation2 [shape = 'f32[8,128]{1,0:T(8,128)}', space=vmem, size = 0x1000, scoped, tag = 'scratch operand']
  #allocation3 [shape = 'f32[8,128]{1,0:T(8,128)}', space=vmem, size = 0x1000, scoped, tag = 'scratch operand']
  #allocation4 [shape = 'f32[8,128]{1,0:T(8,128)}', space=vmem, size = 0x1000, scoped, tag = 'scratch operand']
  #allocation5 [shape = 'f32[8,128]{1,0:T(8,128)}', space=vmem, size = 0x1000, scoped, tag = 'scratch operand']
  #allocation6 [shape = 'f32[8,128]{1,0:T(8,128)}', space=vmem, size = 0x1000, scoped, tag = 'scratch operand']
  %s0 = inlined_call_operand.hbm [shape: f32[8,256], index: 0, kind: input, shape index: {}]
  %s1 = inlined_call_operand.hbm [shape: f32[8,256], index: 1, kind: input, shape index: {}]
  %s2 = inlined_call_operand.vmem [shape: f32[8,1], index: 2, kind: output, shape index: {}]
  %s3 = sld [smem:[#allocation0]]
  $region34: #{tpu_custom_call.1} parent=0
    _
  %s5 = ssub.s32 1, %s3
  %s6 = scalar_select 0, %s5, %s3
  $region1: #{tpu_custom_call.1} parent=0
    #allocation7 [shape = 'u8[8192]{0}', space=vmem, size = 0x2000, scoped, tag = 'input window, operand 0, single buffered']
    #allocation8 [shape = 's32[1]{0}', space=sflag, size = 0x4, scoped, tag = 'scoped memory for tpu_custom_call.1']
    #allocation9 [shape = 'u8[8192]{0}', space=vmem, size = 0x2000, scoped, tag = 'input window, operand 1, single buffered']
    #allocation10 [shape = 's32[1]{0}', space=sflag, size = 0x4, scoped, tag = 'scoped memory for tpu_custom_call.1']
    %7 = vsyncpa [#allocation8], 0
    %8 = vsyncpa [#allocation10], 0
    // Predicated region
    $region2: #{tpu_custom_call.1} parent=1 // pred_check
      _
    $region3: #{tpu_custom_call.1} parent=1 // pred_check_branch
      %10 = sbr.rel (0) target = $region5
    $region4: #{tpu_custom_call.1} parent=1 // pred_region
      %s12 = ssub.s32 256, 256
      %13 = vsyncadd [#allocation8], %s12
      %s15 = sshll.u32 [#allocation7], 4
      %s16 = int_to_ptr.vmem [resolvable:$true] %s15
      %18 = dma.hbm_to_vmem [thread:$0]  %s0, 256, %s16, [#allocation8]
    $region5: #{tpu_custom_call.1} parent=1 // pred_fallthru
      _
    // Predicated region
    $region6: #{tpu_custom_call.1} parent=1 // pred_check
      _
    $region7: #{tpu_custom_call.1} parent=1 // pred_check_branch
      %20 = sbr.rel (0) target = $region9
    $region8: #{tpu_custom_call.1} parent=1 // pred_region
      %s22 = ssub.s32 256, 256
      %23 = vsyncadd [#allocation10], %s22
      %s25 = sshll.u32 [#allocation9], 4
      %s26 = int_to_ptr.vmem [resolvable:$true] %s25
      %28 = dma.hbm_to_vmem [thread:$0]  %s1, 256, %s26, [#allocation10]
    $region9: #{tpu_custom_call.1} parent=1 // pred_fallthru
      _
    // Predicated region
    $region10: #{tpu_custom_call.1} parent=1 // pred_check
      _
    $region11: #{tpu_custom_call.1} parent=1 // pred_check_branch
      %30 = sbr.rel (0) target = $region13
    $region12: #{tpu_custom_call.1} parent=1 // pred_region
      %31 = dma.done [#allocation8], 256
    $region13: #{tpu_custom_call.1} parent=1 // pred_fallthru
      _
    // Predicated region
    $region14: #{tpu_custom_call.1} parent=1 // pred_check
      _
    $region15: #{tpu_custom_call.1} parent=1 // pred_check_branch
      %33 = sbr.rel (0) target = $region17
    $region16: #{tpu_custom_call.1} parent=1 // pred_region
      %34 = dma.done [#allocation10], 256
    $region17: #{tpu_custom_call.1} parent=1 // pred_fallthru
      _
    %p35 = scmp.eq.s32.totalorder 0, 0
    // Predicated region
    $region18: #{tpu_custom_call.1} parent=1 // pred_check
      %p36 = pneg %p35
    $region19: #{tpu_custom_call.1} parent=1 // pred_check_branch
      %38 = sbr.rel (%p36) target = $region21
    $region20: #{tpu_custom_call.1} parent=1 // pred_region
      %39 = vst [vmem:[#allocation2] sm:$0xff] 0.0
      %40 = vst [vmem:[#allocation3] sm:$0xff] 0.0
      %41 = vst [vmem:[#allocation4] sm:$0xff] 0.0
      %42 = vst [vmem:[#allocation5] sm:$0xff] 0.0
      %43 = vst [vmem:[#allocation6] sm:$0xff] 0.0
    $region21: #{tpu_custom_call.1} parent=1 // pred_fallthru
      _
    %v44 = vld [vmem:[#allocation7] sm:$0xff]
    %v45 = vld [vmem:[#allocation9] sm:$0xff]
    %v46 = vadd.f32 %v44, 0.0
    %v47 = vadd.f32 %v45, 0.0
    %v48 = vmul.f32 %v44, %v45
    %v49 = vadd.f32 %v48, 0.0
    %v50 = vmul.f32 %v44, %v44
    %v51 = vadd.f32 %v50, 0.0
    %v52 = vmul.f32 %v45, %v45
    %v53 = vadd.f32 %v52, 0.0
    %v54 = vld [vmem:[#allocation7 + $0x8] sm:$0xff]
    %v55 = vld [vmem:[#allocation9 + $0x8] sm:$0xff]
    %v56 = vadd.f32 %v46, %v54
    %v57 = vadd.f32 %v47, %v55
    %v58 = vmul.f32 %v54, %v55
    %v59 = vadd.f32 %v49, %v58
    %v60 = vmul.f32 %v54, %v54
    %v61 = vadd.f32 %v51, %v60
    %v62 = vmul.f32 %v55, %v55
    %v63 = vadd.f32 %v53, %v62
    %v64 = vld [vmem:[#allocation2] sm:$0xff]
    %v65 = vadd.f32 %v64, %v56
    %66 = vst [vmem:[#allocation2] sm:$0xff] %v65
    %v67 = vld [vmem:[#allocation3] sm:$0xff]
    %v68 = vadd.f32 %v67, %v57
    %69 = vst [vmem:[#allocation3] sm:$0xff] %v68
    %v70 = vld [vmem:[#allocation4] sm:$0xff]
    %v71 = vadd.f32 %v70, %v59
    %72 = vst [vmem:[#allocation4] sm:$0xff] %v71
    %v73 = vld [vmem:[#allocation5] sm:$0xff]
    %v74 = vadd.f32 %v73, %v61
    %75 = vst [vmem:[#allocation5] sm:$0xff] %v74
    %v76 = vld [vmem:[#allocation6] sm:$0xff]
    %v77 = vadd.f32 %v76, %v63
    %78 = vst [vmem:[#allocation6] sm:$0xff] %v77
    // Predicated region
    $region22: #{tpu_custom_call.1} parent=1 // pred_check
      %p79 = pneg %p35
    $region23: #{tpu_custom_call.1} parent=1 // pred_check_branch
      %81 = sbr.rel (%p79) target = $region25
    $region24: #{tpu_custom_call.1} parent=1 // pred_region
      %v82 = vld [vmem:[#allocation2] sm:$0xff]
      %83 = vadd.xlane.f32.xlu0 %v82
      %v84 = vpop.xlane.xlu0 %83
      %v85 = vld [vmem:[#allocation3] sm:$0xff]
      %86 = vadd.xlane.f32.xlu0 %v85
      %v87 = vpop.xlane.xlu0 %86
      %v88 = vld [vmem:[#allocation4] sm:$0xff]
      %89 = vadd.xlane.f32.xlu0 %v88
      %v90 = vpop.xlane.xlu0 %89
      %v91 = vld [vmem:[#allocation5] sm:$0xff]
      %92 = vadd.xlane.f32.xlu0 %v91
      %v93 = vpop.xlane.xlu0 %92
      %v94 = vld [vmem:[#allocation6] sm:$0xff]
      %95 = vadd.xlane.f32.xlu0 %v94
      %v96 = vpop.xlane.xlu0 %95
      %v97 = vmul.f32 %v84, %v87
      %v98 = vmul.f32 %v97, 0.00390625
      %v99 = vsub.f32 %v90, %v98
      %v100 = vmul.f32 %v84, %v84
      %v101 = vmul.f32 %v100, 0.00390625
      %v102 = vsub.f32 %v93, %v101
      %v103 = vmax.f32 %v102, 0.0
      %v104 = vmul.f32 %v87, %v87
      %v105 = vmul.f32 %v104, 0.00390625
      %v106 = vsub.f32 %v96, %v105
      %v107 = vmax.f32 %v106, 0.0
      %v108 = vsub.f32 0.0, %v99
      %v109 = vmul.f32 %v103, %v107
      %v110 = vrsqrt.pop %v109
      %v111 = vmul.f32 %v108, %v110
      %vm112 = vcmask 7168
      %113 = vst.msk [vmem:[%s2] sm:$0xff] %vm112, %v111
    $region25: #{tpu_custom_call.1} parent=1 // pred_fallthru
      _
    // Predicated region
    $region26: #{tpu_custom_call.1} parent=1 // pred_check
      _
    $region27: #{tpu_custom_call.1} parent=1 // pred_check_branch
      %115 = sbr.rel (0) target = $region29
    $region28: #{tpu_custom_call.1} parent=1 // pred_region
      _
    $region29: #{tpu_custom_call.1} parent=1 // pred_fallthru
      _
    // Predicated region
    $region30: #{tpu_custom_call.1} parent=1 // pred_check
      _
    $region31: #{tpu_custom_call.1} parent=1 // pred_check_branch
      %117 = sbr.rel (0) target = $region33
    $region32: #{tpu_custom_call.1} parent=1 // pred_region
      _
    $region33: #{tpu_custom_call.1} parent=1 // pred_fallthru
      _
    %118 = vsyncpa [#allocation8], 1
    %119 = vsyncpa [#allocation10], 1

</llo_original>
